<compile_context>
chip_gen: v7x
topology: tpu7x:2x2x1
jax: 0.10.0
libtpu: 0.0.40
codegen_flags: <defaults>
</compile_context>

<pallas_src>
import jax
import jax.numpy as jnp
from jax.experimental import pallas as pl
from jax.experimental.pallas import tpu as pltpu

N_ITERS = 5


def _num_copies() -> int:
    # Size recurrence of the loop: each iteration prepends 4 copies of x_flat.
    n = 1
    for _ in range(N_ITERS):
        n = 4 + n
    return n  # -> 21


def cat_relu_kernel(x_ref, o_ref):
    """x_ref: (B, F) in VMEM; o_ref: (B, N_COPIES, F) in VMEM.

    One relu on the small input, one broadcast store (no per-copy lane
    splices, no redundant VPU work on the 21 copies).
    """
    b, n_copies, f = o_ref.shape
    x = x_ref[...]
    xr = jnp.maximum(x, jnp.zeros_like(x))          # dtype-stable relu
    o_ref[...] = jnp.broadcast_to(xr[:, None, :], (b, n_copies, f))


def model_forward(x: jax.Array) -> jax.Array:
    """x: (B, C, L) float array. Returns (B, 21*C*L), matching the PyTorch model."""
    b, c, l = x.shape
    f = c * l
    n_copies = _num_copies()

    xf = x.reshape(b, f)  # same row-major flatten as torch .view

    elem_bytes = jnp.dtype(x.dtype).itemsize
    cost = pl.CostEstimate(
        flops=b * n_copies * f,                       # ~504 elementwise ops
        transcendentals=0,
        bytes_accessed=b * f * elem_bytes * (1 + n_copies),  # ~2.2 KiB total
    )

    out3 = pl.pallas_call(
        cat_relu_kernel,
        out_shape=jax.ShapeDtypeStruct((b, n_copies, f), x.dtype),
        in_specs=[pl.BlockSpec(memory_space=pltpu.MemorySpace.VMEM)],
        out_specs=pl.BlockSpec(memory_space=pltpu.MemorySpace.VMEM),
        cost_estimate=cost,
    )(xf)

    # Row-major reshape outside the kernel is free (pure metadata in XLA).
    return out3.reshape(b, n_copies * f)


def _reference(x: jax.Array) -> jax.Array:
    # Pure-JAX reference of the interpreted semantics.
    b = x.shape[0]
    xf = x.reshape(b, -1)
    y = xf
    for _ in range(N_ITERS):
        y = jnp.concatenate([xf, xf, xf, xf, y], axis=1)
    return jnp.maximum(y, 0.0)


if __name__ == "__main__":
    key = jax.random.PRNGKey(0)
    x = jax.random.normal(key, (2, 3, 4), dtype=jnp.float32)

    out = model_forward(x)
    out = jax.block_until_ready(out)

    ref = _reference(x)
    assert out.shape == (2, 21 * 3 * 4), out.shape
    assert out.dtype == x.dtype
    assert jnp.array_equal(out, ref), "mismatch vs reference"

    print("KERNEL_OK")
</pallas_src>

<mosaic_0001>
module attributes {stable_mosaic.version = 11 : i64} {
  func.func @cat_relu_kernel(%arg0: memref<2x12xf32, #tpu.memory_space<vmem>>, %arg1: memref<2x21x12xf32, #tpu.memory_space<vmem>>) attributes {dimension_semantics = [], scalar_prefetch = 0 : i64, scratch_operands = 0 : i64, tpu.core_type = #tpu.core_type<tc>} {
    %c0 = arith.constant 0 : index
    %c0_0 = arith.constant 0 : index
    %0 = vector.load %arg0[%c0, %c0_0] : memref<2x12xf32, #tpu.memory_space<vmem>>, vector<2x12xf32>
    %cst = arith.constant 0.000000e+00 : f32
    %1 = vector.broadcast %cst : f32 to vector<2x12xf32>
    %2 = arith.maximumf %0, %1 : vector<2x12xf32>
    %3 = vector.shape_cast %2 : vector<2x12xf32> to vector<2x1x12xf32>
    %4 = vector.shape_cast %3 : vector<2x1x12xf32> to vector<2x1x12xf32>
    %5 = vector.broadcast %4 : vector<2x1x12xf32> to vector<2x21x12xf32>
    %c0_1 = arith.constant 0 : index
    %c0_2 = arith.constant 0 : index
    %c0_3 = arith.constant 0 : index
    %6 = vector.load %arg1[%c0_1, %c0_2, %c0_3] : memref<2x21x12xf32, #tpu.memory_space<vmem>>, vector<2x21x12xf32>
    tpu.vector_store %arg1[%c0_1, %c0_2, %c0_3], %5 {strides = array<i32>} : memref<2x21x12xf32, #tpu.memory_space<vmem>>, vector<2x21x12xf32>,
    return
  }
}

</mosaic_0001>

<llo_original>
// kernel: tpu_custom_call.1
$region0: #{tpu_custom_call.1}
  #allocation0 [shape = 'u32[]', space=smem, size = 0x4, offset = 0x4, fixed_abs, tag = 'smem constant byte address 0x4 - core index']
  #allocation1 [shape = 'u32[144,128]{1,0:T(1,128)}', space=vmem, size = 0x12000, scoped, tag = 'internal scratch']
  %s0 = inlined_call_operand.hbm [shape: f32[2,12], index: 0, kind: input, shape index: {}]
  %s1 = inlined_call_operand.vmem [shape: f32[2,21,12], index: 1, kind: output, shape index: {}]
  %s2 = sld [smem:[#allocation0]]
  $region18: #{tpu_custom_call.1} parent=0
    _
  %s4 = ssub.s32 1, %s2
  %s5 = scalar_select 0, %s4, %s2
  $region1: #{tpu_custom_call.1} parent=0
    #allocation2 [shape = 'u8[1024]{0}', space=vmem, size = 0x400, scoped, tag = 'input window, operand 0, single buffered']
    #allocation3 [shape = 's32[1]{0}', space=sflag, size = 0x4, scoped, tag = 'scoped memory for tpu_custom_call.1']
    %6 = vsyncpa [#allocation3], 0
    // Predicated region
    $region2: #{tpu_custom_call.1} parent=1 // pred_check
      _
    $region3: #{tpu_custom_call.1} parent=1 // pred_check_branch
      %8 = sbr.rel (0) target = $region5
    $region4: #{tpu_custom_call.1} parent=1 // pred_region
      %s10 = ssub.s32 32, 32
      %11 = vsyncadd [#allocation3], %s10
      %s13 = sshll.u32 [#allocation2], 4
      %s14 = int_to_ptr.vmem [resolvable:$true] %s13
      %16 = dma.hbm_to_vmem [thread:$0]  %s0, 32, %s14, [#allocation3]
    $region5: #{tpu_custom_call.1} parent=1 // pred_fallthru
      _
    // Predicated region
    $region6: #{tpu_custom_call.1} parent=1 // pred_check
      _
    $region7: #{tpu_custom_call.1} parent=1 // pred_check_branch
      %18 = sbr.rel (0) target = $region9
    $region8: #{tpu_custom_call.1} parent=1 // pred_region
      %19 = dma.done [#allocation3], 32
    $region9: #{tpu_custom_call.1} parent=1 // pred_fallthru
      _
    %v20 = vld [vmem:[#allocation2] sm:$0x3]
    %v21 = vmax.f32 %v20, 0.0
    %v24 = vunpack.c.l.s4 1966171168
    %v25 = vunpack.c.0.s8 %v24
    %v26 = vlaneseq
    %v27 = vshrl.u32 %v26, 7
    %v28 = vsub.s32 %v25, %v27
    %v29 = vrot.slane %v21, %v28
    %v30 = vcombine.high %v29, %v29
    %v32 = vunpack.c.l.s4 1966171168
    %v33 = vunpack.c.0.s8 %v32
    %v34 = vlaneseq
    %v35 = vshrl.u32 %v34, 7
    %v36 = vsub.s32 %v33, %v35
    %v37 = vrot.slane %v29, %v36
    %v39 = vunpack.c.l.s4 1966171168
    %v40 = vunpack.c.0.s8 %v39
    %v41 = vlaneseq
    %v42 = vshrl.u32 %v41, 7
    %v43 = vsub.s32 %v40, %v42
    %v44 = vrot.slane %v30, %v43
    %v45 = vlaneseq
    %v46 = vshrl.u32 %v45, 7
    %v47 = vsub.s32 0, %v46
    %v48 = vrot.slane %v37, %v47
    %v49 = vlaneseq
    %v50 = vshrl.u32 %v49, 7
    %v51 = vsub.s32 0, %v50
    %v52 = vrot.slane %v44, %v51
    %vm55 = vcmask 97280
    %56 = vst.msk [vmem:[%s1] sm:$0xff] %vm55, %v48
    %57 = vst.msk [vmem:[%s1 + $0x8] sm:$0xff] %vm55, %v48
    %vm58 = vcmask 94208
    %59 = vst.msk [vmem:[%s1 + $0x10] sm:$0x1f] %vm58, %v48
    %60 = vst.msk [vmem:[%s1 + $0x18] sm:$0xff] %vm55, %v52
    %61 = vst.msk [vmem:[%s1 + $0x20] sm:$0xff] %vm55, %v52
    %62 = vst.msk [vmem:[%s1 + $0x28] sm:$0x1f] %vm58, %v52
    // Predicated region
    $region10: #{tpu_custom_call.1} parent=1 // pred_check
      _
    $region11: #{tpu_custom_call.1} parent=1 // pred_check_branch
      %64 = sbr.rel (0) target = $region13
    $region12: #{tpu_custom_call.1} parent=1 // pred_region
      _
    $region13: #{tpu_custom_call.1} parent=1 // pred_fallthru
      _
    // Predicated region
    $region14: #{tpu_custom_call.1} parent=1 // pred_check
      _
    $region15: #{tpu_custom_call.1} parent=1 // pred_check_branch
      %66 = sbr.rel (0) target = $region17
    $region16: #{tpu_custom_call.1} parent=1 // pred_region
      _
    $region17: #{tpu_custom_call.1} parent=1 // pred_fallthru
      _
    %67 = vsyncpa [#allocation3], 1

</llo_original>
